<compile_context>
chip_gen: v5e
topology: v5e:2x2
jax: 0.10.0
libtpu: 0.0.40
codegen_flags: <defaults>
</compile_context>

<pallas_src>
from functools import partial

import jax
import jax.numpy as jnp
import numpy as np
from jax import lax
from jax.experimental import pallas as pl
from jax.experimental.pallas import tpu as pltpu


# ----------------------------- Pallas kernel -------------------------------
def tabular_mlp_kernel(ids_ref, xnum_ref, wcat_ref, wnum_ref, b1_ref,
                       w2_ref, b2_ref, w3_ref, b3_ref, o_ref,
                       *, offsets, vocab_total):
    ids = ids_ref[...]                                            # [TB, 3] int32
    tb = ids.shape[0]

    # Build the (disjoint-range) multi-hot encoding of the 3 categorical ids.
    iota = lax.broadcasted_iota(jnp.int32, (tb, vocab_total), 1)  # [TB, 24]
    oh = iota == (ids[:, 0:1] + offsets[0])
    for c in range(1, ids.shape[1]):
        oh = oh | (iota == (ids[:, c:c + 1] + offsets[c]))
    oh = oh.astype(jnp.bfloat16)                                  # exact 0/1

    # Layer 1: embeddings folded into wcat (one-hot matmul == gather) plus the
    # input-BN-folded numeric part; f32 accumulation, bias/ReLU in f32.
    h = (jnp.dot(oh, wcat_ref[...], preferred_element_type=jnp.float32)
         + jnp.dot(xnum_ref[...].astype(jnp.bfloat16), wnum_ref[...],
                   preferred_element_type=jnp.float32)
         + b1_ref[...])
    h = jnp.maximum(h, 0.0)

    # Layer 2 (BN1 folded into the weights).
    h = jnp.dot(h.astype(jnp.bfloat16), w2_ref[...],
                preferred_element_type=jnp.float32) + b2_ref[...]
    h = jnp.maximum(h, 0.0)

    # Output layer (BN2 folded).  Narrow masked store is fine: the kernel is
    # vmatmul-issue bound, not vst bound.
    o_ref[...] = jnp.dot(h.astype(jnp.bfloat16), w3_ref[...],
                         preferred_element_type=jnp.float32) + b3_ref[...]


def _round_up(x, m):
    return ((x + m - 1) // m) * m


def run_tabular_model(ids, x_num, w_cat, w_num, b1, w2, b2, w3, b3, *,
                      offsets, vocab_total, tb=4096):
    """ids: [B, 3] int32, x_num: [B, numeric] f32.  Weights bf16, biases f32."""
    B, n_cat = ids.shape
    _, n_num = x_num.shape
    H1 = w_cat.shape[1]
    H2 = w2.shape[1]
    OUT = w3.shape[1]

    # Batch tile: multiple of 8 sublanes, <= tb, and capped at ceil(B/2) so the
    # grid has >= 2 steps whenever possible (both v7x TensorCores get work).
    TB = max(8, min(_round_up(tb, 8), _round_up(pl.cdiv(B, 2), 8)))
    Bp = _round_up(B, TB)
    if Bp != B:
        ids = jnp.pad(ids, ((0, Bp - B), (0, 0)))        # id 0 is a valid row
        x_num = jnp.pad(x_num, ((0, Bp - B), (0, 0)))

    const = lambda i: (0, 0)        # weights/biases: VMEM-resident, DMA'd once

    kernel = partial(tabular_mlp_kernel, offsets=offsets, vocab_total=vocab_total)

    out = pl.pallas_call(
        kernel,
        out_shape=jax.ShapeDtypeStruct((Bp, OUT), jnp.float32),
        grid_spec=pltpu.PrefetchScalarGridSpec(
            num_scalar_prefetch=0,
            grid=(Bp // TB,),
            in_specs=[
                pl.BlockSpec((TB, n_cat), lambda i: (i, 0)),   # int32 ids
                pl.BlockSpec((TB, n_num), lambda i: (i, 0)),   # numeric features
                pl.BlockSpec((vocab_total, H1), const),        # folded emb -> layer1
                pl.BlockSpec((n_num, H1), const),              # folded input BN -> layer1
                pl.BlockSpec((1, H1), const),
                pl.BlockSpec((H1, H2), const),                 # folded BN1 -> layer2
                pl.BlockSpec((1, H2), const),
                pl.BlockSpec((H2, OUT), const),                # folded BN2 -> layer3
                pl.BlockSpec((1, OUT), const),
            ],
            out_specs=pl.BlockSpec((TB, OUT), lambda i: (i, 0)),
        ),
        compiler_params=pltpu.CompilerParams(
            dimension_semantics=("parallel",),                 # 2-TC sharding on v7x
        ),
    )(ids, x_num, w_cat, w_num, b1, w2, b2, w3, b3)

    return out[:B]                    # drop batch padding (no-op when Bp == B)


# -------------------------- parameter construction -------------------------
def bn_affine(key, n, eps=1e-5):
    """Eval-mode BatchNorm1d (running stats) as (scale, shift)."""
    k1, k2, k3, k4 = jax.random.split(key, 4)
    gamma = 1.0 + 0.1 * jax.random.normal(k1, (n,), jnp.float32)
    beta = 0.1 * jax.random.normal(k2, (n,), jnp.float32)
    running_mean = 0.2 * jax.random.normal(k3, (n,), jnp.float32)
    running_var = jax.random.uniform(k4, (n,), jnp.float32, 0.5, 1.5)
    scale = gamma / jnp.sqrt(running_var + eps)
    shift = beta - running_mean * scale
    return scale, shift


def linear_params(key, fan_in, fan_out):
    """PyTorch nn.Linear default init (uniform +-1/sqrt(fan_in)), stored [in, out]."""
    kw, kb = jax.random.split(key)
    bound = 1.0 / np.sqrt(fan_in)
    w = jax.random.uniform(kw, (fan_in, fan_out), jnp.float32, -bound, bound)
    b = jax.random.uniform(kb, (1, fan_out), jnp.float32, -bound, bound)
    return w, b


def fold_pre_affine(scale, shift, w, b):
    """Fold y = (x*scale + shift) @ w + b  into  y = x @ w' + b'  (exact, f32)."""
    return scale[:, None] * w, b + (shift @ w)[None, :]


if __name__ == "__main__":
    # ---- model hyperparameters (small, consistent with the module) ----
    category_sizes = [10, 8, 6]
    embedding_sizes = [(s, min(50, (s + 1) // 2)) for s in category_sizes]  # [(10,5),(8,4),(6,3)]
    numeric_size = 4
    layers = [32, 16]
    output_size = 2

    cat_dim = sum(d for _, d in embedding_sizes)        # 12
    feat_dim = cat_dim + numeric_size                   # 16
    vocab_total = sum(category_sizes)                   # 24
    offsets = tuple(int(o) for o in np.cumsum([0] + category_sizes[:-1]))  # (0, 10, 18)

    key = jax.random.PRNGKey(0)
    keys = jax.random.split(key, 16)

    # embedding tables (PyTorch nn.Embedding init ~ N(0,1))
    emb_tables = [jax.random.normal(keys[i], (n, d), jnp.float32)
                  for i, (n, d) in enumerate(embedding_sizes)]

    # BatchNorm affines (eval mode) and Linear parameters (un-folded originals)
    num_scale, num_shift = bn_affine(keys[3], numeric_size)
    w1, b1 = linear_params(keys[4], feat_dim, layers[0])
    s1, t1 = bn_affine(keys[5], layers[0])
    w2, b2 = linear_params(keys[6], layers[0], layers[1])
    s2, t2 = bn_affine(keys[7], layers[1])
    w3, b3 = linear_params(keys[8], layers[1], output_size)

    # ---- fold (all in f32) ----
    # embeddings -> first vocab_total rows of layer 1
    w_cat_parts, row = [], 0
    for (n, d), E in zip(embedding_sizes, emb_tables):
        w_cat_parts.append(E @ w1[row:row + d])
        row += d
    w_cat = jnp.concatenate(w_cat_parts, axis=0)        # [24, H1]
    # input BN -> numeric rows of layer 1
    w_num = num_scale[:, None] * w1[cat_dim:]           # [4, H1]
    b1_f = b1 + (num_shift @ w1[cat_dim:])[None, :]
    # BN1 -> layer 2, BN2 -> output layer
    w2_f, b2_f = fold_pre_affine(s1, t1, w2, b2)
    w3_f, b3_f = fold_pre_affine(s2, t2, w3, b3)

    # bf16 matmul operands (accumulation stays f32 in-kernel); biases stay f32.
    w_cat_bf = w_cat.astype(jnp.bfloat16)
    w_num_bf = w_num.astype(jnp.bfloat16)
    w2_bf = w2_f.astype(jnp.bfloat16)
    w3_bf = w3_f.astype(jnp.bfloat16)

    # pure-JAX f32 reference (un-folded BN, eval-mode semantics of the module)
    def reference(ids, x_num):
        x_emb = jnp.concatenate(
            [jnp.take(emb_tables[i], ids[:, i], axis=0) for i in range(len(emb_tables))], axis=1)
        x_nb = x_num * num_scale[None, :] + num_shift[None, :]
        feat = jnp.concatenate([x_emb, x_nb], axis=1)
        h = jnp.maximum(feat @ w1 + b1, 0.0) * s1[None, :] + t1[None, :]
        h = jnp.maximum(h @ w2 + b2, 0.0) * s2[None, :] + t2[None, :]
        return h @ w3 + b3

    # ---- run two batch sizes: tiny B=8, and B=300 (exercises batch padding
    # ---- Bp != B and a >=2-step grid) ----
    for bi, B in enumerate((8, 300)):
        kb = jax.random.split(keys[9 + bi], 2)
        ids = jnp.stack(
            [jax.random.randint(jax.random.fold_in(kb[0], i), (B,), 0, n)
             for i, n in enumerate(category_sizes)], axis=1).astype(jnp.int32)   # [B, 3]
        x_num = jax.random.normal(kb[1], (B, numeric_size), jnp.float32)          # [B, 4]

        out = run_tabular_model(ids, x_num, w_cat_bf, w_num_bf, b1_f,
                                w2_bf, b2_f, w3_bf, b3_f,
                                offsets=offsets, vocab_total=vocab_total)
        out = jax.block_until_ready(out)

        ref = reference(ids, x_num)
        np.testing.assert_allclose(np.asarray(out), np.asarray(ref),
                                   rtol=5e-2, atol=5e-2)   # bf16-operand tolerance

    print("KERNEL_OK")
</pallas_src>

<mosaic_0001>
module attributes {stable_mosaic.version = 11 : i64} {
  func.func @tabular_mlp_kernel(%arg0: i32, %arg1: memref<8x3xi32, #tpu.memory_space<vmem>>, %arg2: memref<8x4xf32, #tpu.memory_space<vmem>>, %arg3: memref<24x32xbf16, #tpu.memory_space<vmem>>, %arg4: memref<4x32xbf16, #tpu.memory_space<vmem>>, %arg5: memref<1x32xf32, #tpu.memory_space<vmem>>, %arg6: memref<32x16xbf16, #tpu.memory_space<vmem>>, %arg7: memref<1x16xf32, #tpu.memory_space<vmem>>, %arg8: memref<16x2xbf16, #tpu.memory_space<vmem>>, %arg9: memref<1x2xf32, #tpu.memory_space<vmem>>, %arg10: memref<8x2xf32, #tpu.memory_space<vmem>>) attributes {dimension_semantics = [#tpu.dimension_semantics<parallel>], iteration_bounds = array<i64: 1>, scalar_prefetch = 0 : i64, scratch_operands = 0 : i64, tpu.core_type = #tpu.core_type<tc>, window_params = [{transform_indices = @transform_0, window_bounds = array<i64: 8, 3>}, {transform_indices = @transform_1, window_bounds = array<i64: 8, 4>}, {pipeline_mode = #tpu.pipeline_mode<synchronous>, transform_indices = @transform_2, window_bounds = array<i64: 24, 32>}, {pipeline_mode = #tpu.pipeline_mode<synchronous>, transform_indices = @transform_3, window_bounds = array<i64: 4, 32>}, {pipeline_mode = #tpu.pipeline_mode<synchronous>, transform_indices = @transform_4, window_bounds = array<i64: 1, 32>}, {pipeline_mode = #tpu.pipeline_mode<synchronous>, transform_indices = @transform_5, window_bounds = array<i64: 32, 16>}, {pipeline_mode = #tpu.pipeline_mode<synchronous>, transform_indices = @transform_6, window_bounds = array<i64: 1, 16>}, {pipeline_mode = #tpu.pipeline_mode<synchronous>, transform_indices = @transform_7, window_bounds = array<i64: 16, 2>}, {pipeline_mode = #tpu.pipeline_mode<synchronous>, transform_indices = @transform_8, window_bounds = array<i64: 1, 2>}, {transform_indices = @transform_9, window_bounds = array<i64: 8, 2>}]} {
    %c0 = arith.constant 0 : index
    %c0_0 = arith.constant 0 : index
    %0 = vector.load %arg1[%c0, %c0_0] : memref<8x3xi32, #tpu.memory_space<vmem>>, vector<8x3xi32>
    %1 = tpu.iota {dimensions = array<i32: 1>} : vector<8x24xi32>
    %2 = vector.extract_strided_slice %0 {offsets = [0, 0], sizes = [8, 1], strides = [1, 1]} : vector<8x3xi32> to vector<8x1xi32>
    %c0_i32 = arith.constant 0 : i32
    %3 = vector.broadcast %c0_i32 : i32 to vector<8x1xi32>
    %4 = arith.addi %2, %3 : vector<8x1xi32>
    %5 = vector.broadcast %4 : vector<8x1xi32> to vector<8x24xi32>
    %6 = arith.cmpi eq, %1, %5 : vector<8x24xi32>
    %7 = vector.extract_strided_slice %0 {offsets = [0, 1], sizes = [8, 1], strides = [1, 1]} : vector<8x3xi32> to vector<8x1xi32>
    %c10_i32 = arith.constant 10 : i32
    %8 = vector.broadcast %c10_i32 : i32 to vector<8x1xi32>
    %9 = arith.addi %7, %8 : vector<8x1xi32>
    %10 = vector.broadcast %9 : vector<8x1xi32> to vector<8x24xi32>
    %11 = arith.cmpi eq, %1, %10 : vector<8x24xi32>
    %12 = arith.ori %6, %11 : vector<8x24xi1>
    %13 = vector.extract_strided_slice %0 {offsets = [0, 2], sizes = [8, 1], strides = [1, 1]} : vector<8x3xi32> to vector<8x1xi32>
    %c18_i32 = arith.constant 18 : i32
    %14 = vector.broadcast %c18_i32 : i32 to vector<8x1xi32>
    %15 = arith.addi %13, %14 : vector<8x1xi32>
    %16 = vector.broadcast %15 : vector<8x1xi32> to vector<8x24xi32>
    %17 = arith.cmpi eq, %1, %16 : vector<8x24xi32>
    %18 = arith.ori %12, %17 : vector<8x24xi1>
    %19 = arith.extui %18 : vector<8x24xi1> to vector<8x24xi32>
    %20 = arith.sitofp %19 : vector<8x24xi32> to vector<8x24xf32>
    %21 = arith.truncf %20 : vector<8x24xf32> to vector<8x24xbf16>
    %c0_1 = arith.constant 0 : index
    %c0_2 = arith.constant 0 : index
    %22 = vector.load %arg3[%c0_1, %c0_2] : memref<24x32xbf16, #tpu.memory_space<vmem>>, vector<24x32xbf16>
    %cst = arith.constant dense<0.000000e+00> : vector<8x32xf32>
    %23 = tpu.matmul %21, %22, %cst {dimension_numbers = #tpu.dot_dimension_numbers<[1], [0], [0], [1], [0, 0, 1, 1], [], []>} : vector<8x24xbf16>, vector<24x32xbf16>, vector<8x32xf32> -> vector<8x32xf32>
    %c0_3 = arith.constant 0 : index
    %c0_4 = arith.constant 0 : index
    %24 = vector.load %arg2[%c0_3, %c0_4] : memref<8x4xf32, #tpu.memory_space<vmem>>, vector<8x4xf32>
    %25 = arith.truncf %24 : vector<8x4xf32> to vector<8x4xbf16>
    %c0_5 = arith.constant 0 : index
    %c0_6 = arith.constant 0 : index
    %26 = vector.load %arg4[%c0_5, %c0_6] : memref<4x32xbf16, #tpu.memory_space<vmem>>, vector<4x32xbf16>
    %cst_7 = arith.constant dense<0.000000e+00> : vector<8x32xf32>
    %27 = tpu.matmul %25, %26, %cst_7 {dimension_numbers = #tpu.dot_dimension_numbers<[1], [0], [0], [1], [0, 0, 1, 1], [], []>} : vector<8x4xbf16>, vector<4x32xbf16>, vector<8x32xf32> -> vector<8x32xf32>
    %28 = arith.addf %23, %27 : vector<8x32xf32>
    %c0_8 = arith.constant 0 : index
    %c0_9 = arith.constant 0 : index
    %29 = vector.load %arg5[%c0_8, %c0_9] : memref<1x32xf32, #tpu.memory_space<vmem>>, vector<1x32xf32>
    %30 = vector.broadcast %29 : vector<1x32xf32> to vector<8x32xf32>
    %31 = arith.addf %28, %30 : vector<8x32xf32>
    %cst_10 = arith.constant 0.000000e+00 : f32
    %32 = vector.broadcast %cst_10 : f32 to vector<8x32xf32>
    %33 = arith.maximumf %31, %32 : vector<8x32xf32>
    %34 = arith.truncf %33 : vector<8x32xf32> to vector<8x32xbf16>
    %c0_11 = arith.constant 0 : index
    %c0_12 = arith.constant 0 : index
    %35 = vector.load %arg6[%c0_11, %c0_12] : memref<32x16xbf16, #tpu.memory_space<vmem>>, vector<32x16xbf16>
    %cst_13 = arith.constant dense<0.000000e+00> : vector<8x16xf32>
    %36 = tpu.matmul %34, %35, %cst_13 {dimension_numbers = #tpu.dot_dimension_numbers<[1], [0], [0], [1], [0, 0, 1, 1], [], []>} : vector<8x32xbf16>, vector<32x16xbf16>, vector<8x16xf32> -> vector<8x16xf32>
    %c0_14 = arith.constant 0 : index
    %c0_15 = arith.constant 0 : index
    %37 = vector.load %arg7[%c0_14, %c0_15] : memref<1x16xf32, #tpu.memory_space<vmem>>, vector<1x16xf32>
    %38 = vector.broadcast %37 : vector<1x16xf32> to vector<8x16xf32>
    %39 = arith.addf %36, %38 : vector<8x16xf32>
    %cst_16 = arith.constant 0.000000e+00 : f32
    %40 = vector.broadcast %cst_16 : f32 to vector<8x16xf32>
    %41 = arith.maximumf %39, %40 : vector<8x16xf32>
    %42 = arith.truncf %41 : vector<8x16xf32> to vector<8x16xbf16>
    %c0_17 = arith.constant 0 : index
    %c0_18 = arith.constant 0 : index
    %43 = vector.load %arg8[%c0_17, %c0_18] : memref<16x2xbf16, #tpu.memory_space<vmem>>, vector<16x2xbf16>
    %cst_19 = arith.constant dense<0.000000e+00> : vector<8x2xf32>
    %44 = tpu.matmul %42, %43, %cst_19 {dimension_numbers = #tpu.dot_dimension_numbers<[1], [0], [0], [1], [0, 0, 1, 1], [], []>} : vector<8x16xbf16>, vector<16x2xbf16>, vector<8x2xf32> -> vector<8x2xf32>
    %c0_20 = arith.constant 0 : index
    %c0_21 = arith.constant 0 : index
    %45 = vector.load %arg9[%c0_20, %c0_21] : memref<1x2xf32, #tpu.memory_space<vmem>>, vector<1x2xf32>
    %46 = vector.broadcast %45 : vector<1x2xf32> to vector<8x2xf32>
    %47 = arith.addf %44, %46 : vector<8x2xf32>
    %c0_22 = arith.constant 0 : index
    %c0_23 = arith.constant 0 : index
    %48 = vector.load %arg10[%c0_22, %c0_23] : memref<8x2xf32, #tpu.memory_space<vmem>>, vector<8x2xf32>
    tpu.vector_store %arg10[%c0_22, %c0_23], %47 {strides = array<i32>} : memref<8x2xf32, #tpu.memory_space<vmem>>, vector<8x2xf32>,
    return
  }
  func.func @transform_0(%arg0: i32) -> (i32, i32) {
    %c0_i32 = arith.constant 0 : i32
    %c0_i32_0 = arith.constant 0 : i32
    return %arg0, %c0_i32 : i32, i32
  }
  func.func @transform_1(%arg0: i32) -> (i32, i32) {
    %c0_i32 = arith.constant 0 : i32
    %c0_i32_0 = arith.constant 0 : i32
    return %arg0, %c0_i32 : i32, i32
  }
  func.func @transform_2(%arg0: i32) -> (i32, i32) {
    %c0_i32 = arith.constant 0 : i32
    %c0_i32_0 = arith.constant 0 : i32
    %c0_i32_1 = arith.constant 0 : i32
    return %c0_i32, %c0_i32_0 : i32, i32
  }
  func.func @transform_3(%arg0: i32) -> (i32, i32) {
    %c0_i32 = arith.constant 0 : i32
    %c0_i32_0 = arith.constant 0 : i32
    %c0_i32_1 = arith.constant 0 : i32
    return %c0_i32, %c0_i32_0 : i32, i32
  }
  func.func @transform_4(%arg0: i32) -> (i32, i32) {
    %c0_i32 = arith.constant 0 : i32
    %c0_i32_0 = arith.constant 0 : i32
    %c0_i32_1 = arith.constant 0 : i32
    return %c0_i32, %c0_i32_0 : i32, i32
  }
  func.func @transform_5(%arg0: i32) -> (i32, i32) {
    %c0_i32 = arith.constant 0 : i32
    %c0_i32_0 = arith.constant 0 : i32
    %c0_i32_1 = arith.constant 0 : i32
    return %c0_i32, %c0_i32_0 : i32, i32
  }
  func.func @transform_6(%arg0: i32) -> (i32, i32) {
    %c0_i32 = arith.constant 0 : i32
    %c0_i32_0 = arith.constant 0 : i32
    %c0_i32_1 = arith.constant 0 : i32
    return %c0_i32, %c0_i32_0 : i32, i32
  }
  func.func @transform_7(%arg0: i32) -> (i32, i32) {
    %c0_i32 = arith.constant 0 : i32
    %c0_i32_0 = arith.constant 0 : i32
    %c0_i32_1 = arith.constant 0 : i32
    return %c0_i32, %c0_i32_0 : i32, i32
  }
  func.func @transform_8(%arg0: i32) -> (i32, i32) {
    %c0_i32 = arith.constant 0 : i32
    %c0_i32_0 = arith.constant 0 : i32
    %c0_i32_1 = arith.constant 0 : i32
    return %c0_i32, %c0_i32_0 : i32, i32
  }
  func.func @transform_9(%arg0: i32) -> (i32, i32) {
    %c0_i32 = arith.constant 0 : i32
    %c0_i32_0 = arith.constant 0 : i32
    return %arg0, %c0_i32 : i32, i32
  }
}

</mosaic_0001>

<llo_original>
// kernel: tpu_custom_call.1
$region0: #{tpu_custom_call.1}
  #allocation0 [shape = 'u32[]', space=smem, size = 0x4, offset = 0x4, fixed_abs, tag = 'smem constant byte address 0x4 - core index']
  #allocation1 [shape = 'u32[72,128]{1,0:T(1,128)}', space=vmem, size = 0x9000, scoped, tag = 'internal scratch']
  %s0 = inlined_call_operand.vmem [shape: s32[8,3], index: 0, kind: input, shape index: {}]
  %s1 = inlined_call_operand.vmem [shape: f32[8,4], index: 1, kind: input, shape index: {}]
  %s2 = inlined_call_operand.vmem [shape: bf16[24,32], index: 2, kind: input, shape index: {}]
  %s3 = inlined_call_operand.vmem [shape: bf16[4,32], index: 3, kind: input, shape index: {}]
  %s4 = inlined_call_operand.vmem [shape: f32[1,32], index: 4, kind: input, shape index: {}]
  %s5 = inlined_call_operand.vmem [shape: bf16[32,16], index: 5, kind: input, shape index: {}]
  %s6 = inlined_call_operand.vmem [shape: f32[1,16], index: 6, kind: input, shape index: {}]
  %s7 = inlined_call_operand.vmem [shape: bf16[16,2], index: 7, kind: input, shape index: {}]
  %s8 = inlined_call_operand.vmem [shape: f32[1,2], index: 8, kind: input, shape index: {}]
  %s9 = inlined_call_operand.vmem [shape: f32[8,2], index: 9, kind: output, shape index: {}]
  %s10 = sld [smem:[#allocation0]]
  $region46: #{tpu_custom_call.1} parent=0
    _
  %s12 = ssub.s32 1, %s10
  %s13 = scalar_select 0, %s12, %s10
  // Predicated region
  $region2: #{tpu_custom_call.1} parent=0 // pred_check
    _
  $region3: #{tpu_custom_call.1} parent=0 // pred_check_branch
    %15 = sbr.rel (0) target = $region5
  $region4: #{tpu_custom_call.1} parent=0 // pred_region
    _
  $region5: #{tpu_custom_call.1} parent=0 // pred_fallthru
    _
  // Predicated region
  $region6: #{tpu_custom_call.1} parent=0 // pred_check
    _
  $region7: #{tpu_custom_call.1} parent=0 // pred_check_branch
    %17 = sbr.rel (0) target = $region9
  $region8: #{tpu_custom_call.1} parent=0 // pred_region
    _
  $region9: #{tpu_custom_call.1} parent=0 // pred_fallthru
    _
  // Predicated region
  $region10: #{tpu_custom_call.1} parent=0 // pred_check
    _
  $region11: #{tpu_custom_call.1} parent=0 // pred_check_branch
    %19 = sbr.rel (0) target = $region13
  $region12: #{tpu_custom_call.1} parent=0 // pred_region
    _
  $region13: #{tpu_custom_call.1} parent=0 // pred_fallthru
    _
  // Predicated region
  $region14: #{tpu_custom_call.1} parent=0 // pred_check
    _
  $region15: #{tpu_custom_call.1} parent=0 // pred_check_branch
    %21 = sbr.rel (0) target = $region17
  $region16: #{tpu_custom_call.1} parent=0 // pred_region
    _
  $region17: #{tpu_custom_call.1} parent=0 // pred_fallthru
    _
  // Predicated region
  $region18: #{tpu_custom_call.1} parent=0 // pred_check
    _
  $region19: #{tpu_custom_call.1} parent=0 // pred_check_branch
    %23 = sbr.rel (0) target = $region21
  $region20: #{tpu_custom_call.1} parent=0 // pred_region
    _
  $region21: #{tpu_custom_call.1} parent=0 // pred_fallthru
    _
  // Predicated region
  $region22: #{tpu_custom_call.1} parent=0 // pred_check
    _
  $region23: #{tpu_custom_call.1} parent=0 // pred_check_branch
    %25 = sbr.rel (0) target = $region25
  $region24: #{tpu_custom_call.1} parent=0 // pred_region
    _
  $region25: #{tpu_custom_call.1} parent=0 // pred_fallthru
    _
  // Predicated region
  $region26: #{tpu_custom_call.1} parent=0 // pred_check
    _
  $region27: #{tpu_custom_call.1} parent=0 // pred_check_branch
    %27 = sbr.rel (0) target = $region29
  $region28: #{tpu_custom_call.1} parent=0 // pred_region
    _
  $region29: #{tpu_custom_call.1} parent=0 // pred_fallthru
    _
  // Predicated region
  $region30: #{tpu_custom_call.1} parent=0 // pred_check
    _
  $region31: #{tpu_custom_call.1} parent=0 // pred_check_branch
    %29 = sbr.rel (0) target = $region33
  $region32: #{tpu_custom_call.1} parent=0 // pred_region
    _
  $region33: #{tpu_custom_call.1} parent=0 // pred_fallthru
    _
  // Predicated region
  $region34: #{tpu_custom_call.1} parent=0 // pred_check
    _
  $region35: #{tpu_custom_call.1} parent=0 // pred_check_branch
    %31 = sbr.rel (0) target = $region37
  $region36: #{tpu_custom_call.1} parent=0 // pred_region
    _
  $region37: #{tpu_custom_call.1} parent=0 // pred_fallthru
    _
  %v33 = vld [vmem:[%s0] sm:$0xff]
  %v34 = vlaneseq
  %v35 = vand.u32 %v34, 127
  %36 = vset.pattern.permute.xlu0 0
  %37 = vperm.xlu0 %36, %v33
  %v38 = vpop.permute.xlu0 %37
  %vm39 = vcmp.eq.s32.totalorder %v35, %v38
  %v40 = vadd.s32 %v33, 10
  %41 = vset.pattern.permute.xlu0 1
  %42 = vperm.xlu0 %41, %v40
  %v43 = vpop.permute.xlu0 %42
  %vm44 = vcmp.eq.s32.totalorder %v35, %v43
  %vm45 = vmor %vm39, %vm44
  %v46 = vadd.s32 %v33, 18
  %47 = vset.pattern.permute.xlu0 2
  %48 = vperm.xlu0 %47, %v46
  %v49 = vpop.permute.xlu0 %48
  %vm50 = vcmp.eq.s32.totalorder %v35, %v49
  %vm51 = vmor %vm45, %vm50
  %v52 = vsel %vm51, 1, 0
  %v53 = vcvt.s32.f32 %v52
  %v54 = vpack.c.bf16 %v53, %v53
  %v55 = vld [vmem:[%s2] sm:$0xf]
  %v56 = vld [vmem:[%s2 + $0x4] sm:$0xf]
  %v57 = vld [vmem:[%s2 + $0x8] sm:$0xf]
  %v58 = vld [vmem:[%s1] sm:$0xff]
  %v59 = vpack.c.bf16 %v58, %v58
  %v60 = vld [vmem:[%s3] sm:$0x3]
  %vm61 = vcmask 31744
  %v63 = vsel %vm61, %v59, 0
  %vm65 = vcmask 1041408
  %v67 = vsel %vm65, %v60, 0
  %69 = vmatpush.bf16.msra.mxu0 0
  %70 = vmatpush.bf16.msra.mxu0 0
  %71 = vmatpush.bf16.msra.mxu0 0
  %72 = vmatpush.bf16.msra.mxu0 0
  %73 = vmatpush.bf16.msra.mxu0 0
  %74 = vmatpush.bf16.msra.mxu0 0
  %75 = vmatpush.bf16.msra.mxu0 0
  %76 = vmatpush.bf16.msra.mxu0 %v67
  %77 = vmatmul.bf16.gmra.mxu0 %v63
  %v78 = vpop.f32.mrf.mxu0
  %v79 = vadd.f32 0.0, %v78
  %v80 = vpop.f32.mrf.mxu0
  %81 = vdwg.mxu0
  %v85 = vunpack.c.l.b16 %v55
  %v86 = vunpack.c.l.b16 %v56
  %v87 = vunpack.c.l.b16 %v57
  %v88 = vpack.c.b16 %v86, %v85
  %v89 = vpack.c.b16 %v87, %v87
  %vm91 = vcmask 195584
  %v93 = vsel %vm91, %v54, 0
  %vm95 = vcmask 1043456
  %v97 = vsel %vm95, %v89, 0
  %99 = vmatpush.bf16.msra.mxu0 0
  %100 = vmatpush.bf16.msra.mxu0 0
  %101 = vmatpush.bf16.msra.mxu0 0
  %102 = vmatpush.bf16.msra.mxu0 0
  %103 = vmatpush.bf16.msra.mxu0 0
  %104 = vmatpush.bf16.msra.mxu0 0
  %105 = vmatpush.bf16.msra.mxu0 %v97
  %106 = vmatpush.bf16.msra.mxu0 %v88
  %107 = vmatmul.bf16.gmra.mxu0 %v93
  %v108 = vpop.f32.mrf.mxu0
  %v109 = vadd.f32 %v79, %v108
  %v110 = vpop.f32.mrf.mxu0
  %111 = vdwg.mxu0
  %v112 = vld [vmem:[%s4] sm:$0x1]
  %v114 = vperm.slane %v112, 0
  %v116 = vadd.f32 %v109, %v114
  %v117 = vmax.f32 %v116, 0.0
  %v118 = vpack.c.bf16 %v117, %v117
  %v119 = vld [vmem:[%s5] sm:$0xf]
  %v120 = vld [vmem:[%s5 + $0x4] sm:$0xf]
  %v121 = vld [vmem:[%s5 + $0x8] sm:$0xf]
  %v122 = vld [vmem:[%s5 + $0xc] sm:$0xf]
  %v123 = vld [vmem:[%s6] sm:$0x1]
  %v125 = vperm.slane %v123, 0
  %v131 = vunpack.c.l.b16 %v119
  %v132 = vunpack.c.l.b16 %v120
  %v133 = vunpack.c.l.b16 %v121
  %v134 = vunpack.c.l.b16 %v122
  %v135 = vpack.c.b16 %v132, %v131
  %v136 = vpack.c.b16 %v134, %v133
  %vm139 = vcmask 261120
  %v141 = vsel %vm139, %v118, 0
  %143 = vmatpush.bf16.msra.mxu0 0
  %144 = vmatpush.bf16.msra.mxu0 0
  %145 = vmatpush.bf16.msra.mxu0 0
  %146 = vmatpush.bf16.msra.mxu0 0
  %147 = vmatpush.bf16.msra.mxu0 0
  %148 = vmatpush.bf16.msra.mxu0 0
  %149 = vmatpush.bf16.msra.mxu0 %v136
  %150 = vmatpush.bf16.msra.mxu0 %v135
  %151 = vmatmul.bf16.gmra.mxu0 %v141
  %v152 = vpop.f32.mrf.mxu0
  %v153 = vadd.f32 %v125, %v152
  %v154 = vpop.f32.mrf.mxu0
  %155 = vdwg.mxu0
  %v156 = vmax.f32 %v153, 0.0
  %v157 = vpack.c.bf16 %v156, %v156
  %v158 = vld [vmem:[%s7] sm:$0xf]
  %v159 = vld [vmem:[%s7 + $0x4] sm:$0xf]
  %v160 = vld [vmem:[%s8] sm:$0x1]
  %v162 = vperm.slane %v160, 0
  %v166 = vunpack.c.l.b16 %v158
  %v167 = vunpack.c.l.b16 %v159
  %v168 = vpack.c.b16 %v167, %v166
  %vm170 = vcmask 130048
  %v172 = vsel %vm170, %v157, 0
  %174 = vmatpush.bf16.msra.mxu0 0
  %175 = vmatpush.bf16.msra.mxu0 0
  %176 = vmatpush.bf16.msra.mxu0 0
  %177 = vmatpush.bf16.msra.mxu0 0
  %178 = vmatpush.bf16.msra.mxu0 0
  %179 = vmatpush.bf16.msra.mxu0 0
  %180 = vmatpush.bf16.msra.mxu0 0
  %181 = vmatpush.bf16.msra.mxu0 %v168
  %182 = vmatmul.bf16.gmra.mxu0 %v172
  %v183 = vpop.f32.mrf.mxu0
  %v184 = vadd.f32 %v162, %v183
  %v185 = vpop.f32.mrf.mxu0
  %186 = vdwg.mxu0
  %vm187 = vcmask 15360
  %188 = vst.msk [vmem:[%s9] sm:$0xff] %vm187, %v184
  // Predicated region
  $region38: #{tpu_custom_call.1} parent=0 // pred_check
    _
  $region39: #{tpu_custom_call.1} parent=0 // pred_check_branch
    %190 = sbr.rel (0) target = $region41
  $region40: #{tpu_custom_call.1} parent=0 // pred_region
    _
  $region41: #{tpu_custom_call.1} parent=0 // pred_fallthru
    _
  // Predicated region
  $region42: #{tpu_custom_call.1} parent=0 // pred_check
    _
  $region43: #{tpu_custom_call.1} parent=0 // pred_check_branch
    %192 = sbr.rel (0) target = $region45
  $region44: #{tpu_custom_call.1} parent=0 // pred_region
    _
  $region45: #{tpu_custom_call.1} parent=0 // pred_fallthru
    _

</llo_original>
